<compile_context>
chip_gen: v6e
topology: v6e:2x2x1
jax: 0.10.0
libtpu: 0.0.40
codegen_flags: <defaults>
</compile_context>

<pallas_src>
import functools

import jax
import jax.numpy as jnp
from jax import lax
from jax.experimental import pallas as pl
from jax.experimental.pallas import tpu as pltpu

_EPS = 1e-8


# --------------------------------------------------------------------------
# softmax (temperature > 0) kernel
# --------------------------------------------------------------------------
def _softmax_loss_kernel(yp_ref, yrow_ref, y_hbm_ref, out_ref,
                         ynorm_ref, colmax_ref, colsum_ref,
                         mse_acc_ref, cos_acc_ref, d1_acc_ref,
                         stage_ref, dma_sem,
                         *, n, d, tn, temperature, lam, cos_weight, contra_p,
                         fixed_shift):
    i = pl.program_id(0)
    nblocks = pl.num_programs(0)
    inv_temp = 1.0 / temperature
    n_chunks = n // tn  # static

    # ---- one-time init: zero accumulators, build bf16 normalized-y cache ---
    @pl.when(i == 0)
    def _init():
        mse_acc_ref[...] = jnp.zeros_like(mse_acc_ref)
        cos_acc_ref[...] = jnp.zeros_like(cos_acc_ref)
        d1_acc_ref[...] = jnp.zeros_like(d1_acc_ref)
        colsum_ref[...] = jnp.zeros_like(colsum_ref)
        if fixed_shift:
            colmax_ref[...] = jnp.zeros_like(colmax_ref)          # unused
        else:
            colmax_ref[...] = jnp.full(colmax_ref.shape, -jnp.inf, jnp.float32)

        # Chunked HBM -> VMEM DMA through a small staging buffer; normalize
        # and downcast in place.  One-time cost, tiny peak footprint.
        def _chunk(c, carry):
            start = pl.multiple_of(c * tn, tn)
            cp = pltpu.make_async_copy(
                y_hbm_ref.at[pl.ds(start, tn), :], stage_ref, dma_sem)
            cp.start()
            cp.wait()
            blk = stage_ref[...].astype(jnp.float32)
            nrm = jnp.sqrt(jnp.sum(blk * blk, axis=-1, keepdims=True))
            ynorm_ref[pl.ds(start, tn), :] = (
                blk * (1.0 / jnp.maximum(nrm, _EPS))).astype(ynorm_ref.dtype)
            return carry

        lax.fori_loop(0, n_chunks, _chunk, 0)

    # ---- streamed row blocks -----------------------------------------------
    yp = yp_ref[...].astype(jnp.float32)                  # (tn, d)
    yb = yrow_ref[...].astype(jnp.float32)                # (tn, d) raw y rows

    # MSE partial: sublane reduce only -> lane-dense (1, d) accumulator.
    diff = yp - yb
    mse_acc_ref[...] += jnp.sum(diff * diff, axis=0, keepdims=True)

    # f32-exact analytic cosine diagonal (no NxN eye mask needed).
    np_ = jnp.sqrt(jnp.sum(yp * yp, axis=-1, keepdims=True))
    ny_ = jnp.sqrt(jnp.sum(yb * yb, axis=-1, keepdims=True))
    yp_n = yp * (1.0 / jnp.maximum(np_, _EPS))
    yb_n = yb * (1.0 / jnp.maximum(ny_, _EPS))
    cos_diag = jnp.sum(yp_n * yb_n, axis=-1, keepdims=True)          # (tn, 1)
    cos_acc_ref[...] += cos_diag

    # ---- (tn, n) similarity row tile on the MXU (bf16 cache operands) ------
    sim_t = lax.dot_general(
        yp_n.astype(ynorm_ref.dtype), ynorm_ref[...],
        dimension_numbers=(((1,), (1,)), ((), ())),
        preferred_element_type=jnp.float32) * inv_temp               # (tn, n)

    if fixed_shift:
        # Rows are unit-normalized, so sim_t in [-1/T, 1/T]; a shared shift
        # lets us exponentiate once for both the row LSE and the column LSE.
        p = jnp.exp(sim_t - inv_temp)
        lse1 = inv_temp + jnp.log(jnp.sum(p, axis=1, keepdims=True))
        colsum_ref[...] += jnp.sum(p, axis=0, keepdims=True)
    else:
        # Tracked-max fallback (extreme temperatures).
        m1 = jnp.max(sim_t, axis=1, keepdims=True)
        lse1 = m1 + jnp.log(jnp.sum(jnp.exp(sim_t - m1), axis=1, keepdims=True))
        tile_max = jnp.max(sim_t, axis=0, keepdims=True)
        new_max = jnp.maximum(colmax_ref[...], tile_max)
        colsum_ref[...] = (colsum_ref[...] * jnp.exp(colmax_ref[...] - new_max)
                           + jnp.sum(jnp.exp(sim_t - new_max), axis=0,
                                     keepdims=True))
        colmax_ref[...] = new_max

    # diag of log_softmax(dim=1): analytic diagonal minus row LSE.
    d1_acc_ref[...] += cos_diag * inv_temp - lse1                    # (tn, 1)

    # ---- finalize on the last row block -------------------------------------
    @pl.when(i == nblocks - 1)
    def _finalize():
        inv_n = 1.0 / n
        mse = jnp.sum(mse_acc_ref[...]) * (1.0 / (n * d))
        cos_sum = jnp.sum(cos_acc_ref[...])
        cos_loss = 1.0 - cos_sum * inv_n
        mse_cos = (1.0 - cos_weight) * mse + cos_weight * cos_loss
        if fixed_shift:
            col_lse = inv_temp + jnp.log(colsum_ref[...])            # (1, n)
        else:
            col_lse = colmax_ref[...] + jnp.log(colsum_ref[...])
        diag0_sum = cos_sum * inv_temp - jnp.sum(col_lse)
        d1_sum = jnp.sum(d1_acc_ref[...])
        contra = -(lam * d1_sum + (1.0 - lam) * diag0_sum) * inv_n
        total = (1.0 - contra_p) * mse_cos + contra_p * contra
        out_ref[...] = jnp.reshape(total, (1, 1))


# --------------------------------------------------------------------------
# temperature <= 0 kernel: purely elementwise, no NxN / cache / column work.
# --------------------------------------------------------------------------
def _plain_loss_kernel(yp_ref, yrow_ref, out_ref, mse_acc_ref, cos_acc_ref,
                       *, n, d, cos_weight, contra_p):
    i = pl.program_id(0)
    nblocks = pl.num_programs(0)

    @pl.when(i == 0)
    def _init():
        mse_acc_ref[...] = jnp.zeros_like(mse_acc_ref)
        cos_acc_ref[...] = jnp.zeros_like(cos_acc_ref)

    yp = yp_ref[...].astype(jnp.float32)
    yb = yrow_ref[...].astype(jnp.float32)
    diff = yp - yb
    mse_acc_ref[...] += jnp.sum(diff * diff, axis=0, keepdims=True)

    np_ = jnp.sqrt(jnp.sum(yp * yp, axis=-1, keepdims=True))
    ny_ = jnp.sqrt(jnp.sum(yb * yb, axis=-1, keepdims=True))
    cos_diag = jnp.sum(yp * yb, axis=-1, keepdims=True) / (
        jnp.maximum(np_, _EPS) * jnp.maximum(ny_, _EPS))
    cos_acc_ref[...] += cos_diag

    @pl.when(i == nblocks - 1)
    def _finalize():
        inv_n = 1.0 / n
        mse = jnp.sum(mse_acc_ref[...]) * (1.0 / (n * d))
        cos_sum = jnp.sum(cos_acc_ref[...])
        cos_loss = 1.0 - cos_sum * inv_n
        mse_cos = (1.0 - cos_weight) * mse + cos_weight * cos_loss
        contra = -(cos_sum * inv_n)
        total = (1.0 - contra_p) * mse_cos + contra_p * contra
        out_ref[...] = jnp.reshape(total, (1, 1))


# --------------------------------------------------------------------------
# wrapper
# --------------------------------------------------------------------------
def _pick_row_block(n, requested=None):
    if requested is not None:
        if n % requested == 0 and (requested % 8 == 0 or requested == n):
            return requested
        raise ValueError(f"row_block={requested} incompatible with n={n}")
    # Cap tn so the live (tn, n) f32 sim tile (+ its exp) stays ~<= 4 MiB;
    # prefer MXU-friendly 256/128 row heights.
    cap = max(128, (4 * 1024 * 1024) // max(8 * n, 1))
    for cand in (512, 384, 256, 128, 64, 32, 16, 8):
        if cand <= cap and n % cand == 0:
            return cand
    return n   # fallback: a single full-height block


def _vmem_limit_bytes(n, d, tn, pred_dtype, y_dtype, cache_dtype):
    ib_p = jnp.dtype(pred_dtype).itemsize
    ib_y = jnp.dtype(y_dtype).itemsize
    ib_c = jnp.dtype(cache_dtype).itemsize
    needed = (n * d * ib_c                     # normalized-y cache
              + 2 * tn * d * (ib_p + ib_y)     # double-buffered row windows
              + tn * d * ib_y                  # DMA staging chunk
              + 2 * n * 4                      # column LSE scratches
              + (d + 2 * tn) * 4               # small accumulators
              + 2 * tn * n * 4)                # live sim tile + its exp
    try:
        info = pltpu.get_tpu_info()
        cap = int(getattr(info, "vmem_capacity_bytes") * 0.85)
    except Exception:
        cap = 64 * 1024 * 1024                 # conservative (fits v7x)
    return max(32 * 1024 * 1024, min(int(needed * 1.5) + (4 << 20), cap))


def mse_cos_contrastive_loss(y_pred, y, temperature=0.5, cos_weight=0.5,
                             contra_p=0.5, lam=0.5, row_block=None,
                             precise=False):
    assert y_pred.ndim == 2 and y_pred.shape == y.shape
    n, d = y_pred.shape
    tn = _pick_row_block(n, row_block)
    nblocks = n // tn
    use_softmax = float(temperature) > 0.0

    if not use_softmax:
        # Reduced spec: no NxN work, no cache, no column scratches.
        kernel = functools.partial(_plain_loss_kernel, n=n, d=d,
                                   cos_weight=float(cos_weight),
                                   contra_p=float(contra_p))
        grid_spec = pltpu.PrefetchScalarGridSpec(
            num_scalar_prefetch=0, grid=(nblocks,),
            in_specs=[pl.BlockSpec((tn, d), lambda i: (i, 0)),
                      pl.BlockSpec((tn, d), lambda i: (i, 0))],
            out_specs=pl.BlockSpec((1, 1), lambda i: (0, 0)),
            scratch_shapes=[pltpu.VMEM((1, d), jnp.float32),
                            pltpu.VMEM((tn, 1), jnp.float32)])
        out = pl.pallas_call(
            kernel, out_shape=jax.ShapeDtypeStruct((1, 1), jnp.float32),
            grid_spec=grid_spec,
            compiler_params=pltpu.CompilerParams(
                dimension_semantics=("arbitrary",),
                vmem_limit_bytes=32 * 1024 * 1024),
        )(y_pred, y)
        return out[0, 0]

    cache_dtype = jnp.float32 if precise else jnp.bfloat16
    # Fixed-shift LSE is safe whenever 1/T is moderate (normalized rows).
    fixed_shift = float(temperature) >= 0.02

    kernel = functools.partial(
        _softmax_loss_kernel, n=n, d=d, tn=tn,
        temperature=float(temperature), lam=float(lam),
        cos_weight=float(cos_weight), contra_p=float(contra_p),
        fixed_shift=fixed_shift)

    cost = pl.CostEstimate(
        flops=int(2.0 * n * n * d + 14.0 * n * d + 6.0 * n * n),
        transcendentals=int((n * n if fixed_shift else 2 * n * n) + 8 * n),
        bytes_accessed=int(2 * n * d * jnp.dtype(y_pred.dtype).itemsize
                           + 2 * n * d * jnp.dtype(y.dtype).itemsize + 4),
    )

    grid_spec = pltpu.PrefetchScalarGridSpec(
        num_scalar_prefetch=0,
        grid=(nblocks,),
        in_specs=[
            pl.BlockSpec((tn, d), lambda i: (i, 0)),   # y_pred row block
            pl.BlockSpec((tn, d), lambda i: (i, 0)),   # y row block (MSE/diag)
            pl.BlockSpec(memory_space=pl.ANY),         # y raw HBM (cache build)
        ],
        out_specs=pl.BlockSpec((1, 1), lambda i: (0, 0)),
        scratch_shapes=[
            pltpu.VMEM((n, d), cache_dtype),    # row-normalized y cache (bf16)
            pltpu.VMEM((1, n), jnp.float32),    # tracked column max (fallback)
            pltpu.VMEM((1, n), jnp.float32),    # online column sum-exp
            pltpu.VMEM((1, d), jnp.float32),    # MSE partials (lane-dense)
            pltpu.VMEM((tn, 1), jnp.float32),   # diag cosine partials
            pltpu.VMEM((tn, 1), jnp.float32),   # row log-softmax diag partials
            pltpu.VMEM((tn, d), y.dtype),       # DMA staging chunk of y
            pltpu.SemaphoreType.DMA(()),
        ],
    )

    out = pl.pallas_call(
        kernel,
        out_shape=jax.ShapeDtypeStruct((1, 1), jnp.float32),
        grid_spec=grid_spec,
        compiler_params=pltpu.CompilerParams(
            dimension_semantics=("arbitrary",),
            vmem_limit_bytes=_vmem_limit_bytes(n, d, tn, y_pred.dtype,
                                               y.dtype, cache_dtype)),
        cost_estimate=cost,
    )(y_pred, y, y)
    return out[0, 0]


# --------------------------------------------------------------------------
# pure-JAX reference (mirror of the PyTorch module, HIGHEST-precision matmul)
# --------------------------------------------------------------------------
def _reference_loss(y_pred, y, temperature=0.5, cos_weight=0.5, contra_p=0.5,
                    lam=0.5):
    eps = 1e-8
    mse = jnp.mean((y_pred - y) ** 2)
    np_ = jnp.maximum(jnp.linalg.norm(y_pred, axis=-1, keepdims=True), eps)
    ny_ = jnp.maximum(jnp.linalg.norm(y, axis=-1, keepdims=True), eps)
    cos_diag = jnp.sum(y_pred * y, axis=-1, keepdims=True) / (np_ * ny_)
    cos_loss = jnp.mean(1.0 - cos_diag)
    mse_cos = (1.0 - cos_weight) * mse + cos_weight * cos_loss
    sim = jnp.matmul(y_pred, y.T,
                     precision=jax.lax.Precision.HIGHEST) / (np_ * ny_.T)
    if temperature > 0.0:
        sim_t = sim / temperature
        d1 = jnp.diagonal(jax.nn.log_softmax(sim_t, axis=1))
        d0 = jnp.diagonal(jax.nn.log_softmax(sim_t, axis=0))
        contra = jnp.mean(-(lam * d1 + (1.0 - lam) * d0))
    else:
        contra = jnp.mean(-jnp.diagonal(sim))
    return (1.0 - contra_p) * mse_cos + contra_p * contra


if __name__ == "__main__":
    key = jax.random.PRNGKey(0)
    k1, k2 = jax.random.split(key)
    N, D = 32, 128   # batch of 32 embeddings, hidden dim 128
    y_pred = jax.random.normal(k1, (N, D), dtype=jnp.float32)
    y = jax.random.normal(k2, (N, D), dtype=jnp.float32)

    ref = _reference_loss(y_pred, y, temperature=0.5)

    # Default path: bf16 normalized cache feeding the MXU + fixed-shift LSE.
    # bf16 operands widen the error vs the HIGHEST-precision reference, so
    # the tolerance here is looser than the f32 "precise" path below.
    loss = jax.block_until_ready(
        mse_cos_contrastive_loss(y_pred, y, temperature=0.5))
    assert jnp.allclose(loss, ref, rtol=5e-3, atol=5e-3), (loss, ref)

    # Multi-block grid: exercises the online column LSE and the chunked
    # HBM->VMEM cache build (4 row blocks).
    loss_mb = jax.block_until_ready(
        mse_cos_contrastive_loss(y_pred, y, temperature=0.5, row_block=8))
    assert jnp.allclose(loss_mb, ref, rtol=5e-3, atol=5e-3), (loss_mb, ref)

    # Precise (f32 cache / f32 matmul) path, tight tolerance.
    loss_f32 = jax.block_until_ready(
        mse_cos_contrastive_loss(y_pred, y, temperature=0.5, row_block=8,
                                 precise=True))
    assert jnp.allclose(loss_f32, ref, rtol=2e-4, atol=2e-4), (loss_f32, ref)

    # temperature <= 0 path: reduced kernel, no NxN / cache / column work.
    ref0 = _reference_loss(y_pred, y, temperature=0.0)
    loss0 = jax.block_until_ready(
        mse_cos_contrastive_loss(y_pred, y, temperature=0.0))
    assert jnp.allclose(loss0, ref0, rtol=1e-5, atol=1e-5), (loss0, ref0)

    print("KERNEL_OK")
</pallas_src>

<mosaic_0001>
module attributes {stable_mosaic.version = 11 : i64} {
  func.func @_softmax_loss_kernel(%arg0: i32, %arg1: memref<32x128xf32, #tpu.memory_space<vmem>>, %arg2: memref<32x128xf32, #tpu.memory_space<vmem>>, %arg3: memref<32x128xf32, #tpu.memory_space<any>>, %arg4: memref<1x1xf32, #tpu.memory_space<vmem>>, %arg5: memref<32x128xbf16, #tpu.memory_space<vmem>>, %arg6: memref<1x32xf32, #tpu.memory_space<vmem>>, %arg7: memref<1x32xf32, #tpu.memory_space<vmem>>, %arg8: memref<1x128xf32, #tpu.memory_space<vmem>>, %arg9: memref<32x1xf32, #tpu.memory_space<vmem>>, %arg10: memref<32x1xf32, #tpu.memory_space<vmem>>, %arg11: memref<32x128xf32, #tpu.memory_space<vmem>>, %arg12: memref<!tpu.dma_semaphore, #tpu.memory_space<semaphore_mem>>) attributes {dimension_semantics = [#tpu.dimension_semantics<arbitrary>], iteration_bounds = array<i64: 1>, scalar_prefetch = 0 : i64, scratch_operands = 8 : i64, tpu.core_type = #tpu.core_type<tc>, window_params = [{transform_indices = @transform_0, window_bounds = array<i64: 32, 128>}, {transform_indices = @transform_1, window_bounds = array<i64: 32, 128>}, {}, {pipeline_mode = #tpu.pipeline_mode<synchronous>, transform_indices = @transform_3, window_bounds = array<i64: 1, 1>}]} {
    %c0_i32 = arith.constant 0 : i32
    %0 = arith.cmpi eq, %arg0, %c0_i32 : i32
    %1 = arith.extui %0 : i1 to i32
    %c0_i32_0 = arith.constant 0 : i32
    %2 = arith.cmpi ne, %1, %c0_i32_0 : i32
    scf.if %2 {
      %cst_38 = arith.constant 0.000000e+00 : f32
      %65 = vector.broadcast %cst_38 : f32 to vector<1x128xf32>
      %c0_39 = arith.constant 0 : index
      %c0_40 = arith.constant 0 : index
      %66 = vector.load %arg8[%c0_39, %c0_40] : memref<1x128xf32, #tpu.memory_space<vmem>>, vector<1x128xf32>
      tpu.vector_store %arg8[%c0_39, %c0_40], %65 {strides = array<i32>} : memref<1x128xf32, #tpu.memory_space<vmem>>, vector<1x128xf32>,
      %cst_41 = arith.constant 0.000000e+00 : f32
      %67 = vector.broadcast %cst_41 : f32 to vector<32x1xf32>
      %c0_42 = arith.constant 0 : index
      %c0_43 = arith.constant 0 : index
      %68 = vector.load %arg9[%c0_42, %c0_43] : memref<32x1xf32, #tpu.memory_space<vmem>>, vector<32x1xf32>
      tpu.vector_store %arg9[%c0_42, %c0_43], %67 {strides = array<i32>} : memref<32x1xf32, #tpu.memory_space<vmem>>, vector<32x1xf32>,
      %cst_44 = arith.constant 0.000000e+00 : f32
      %69 = vector.broadcast %cst_44 : f32 to vector<32x1xf32>
      %c0_45 = arith.constant 0 : index
      %c0_46 = arith.constant 0 : index
      %70 = vector.load %arg10[%c0_45, %c0_46] : memref<32x1xf32, #tpu.memory_space<vmem>>, vector<32x1xf32>
      tpu.vector_store %arg10[%c0_45, %c0_46], %69 {strides = array<i32>} : memref<32x1xf32, #tpu.memory_space<vmem>>, vector<32x1xf32>,
      %cst_47 = arith.constant 0.000000e+00 : f32
      %71 = vector.broadcast %cst_47 : f32 to vector<1x32xf32>
      %c0_48 = arith.constant 0 : index
      %c0_49 = arith.constant 0 : index
      %72 = vector.load %arg7[%c0_48, %c0_49] : memref<1x32xf32, #tpu.memory_space<vmem>>, vector<1x32xf32>
      tpu.vector_store %arg7[%c0_48, %c0_49], %71 {strides = array<i32>} : memref<1x32xf32, #tpu.memory_space<vmem>>, vector<1x32xf32>,
      %cst_50 = arith.constant 0.000000e+00 : f32
      %73 = vector.broadcast %cst_50 : f32 to vector<1x32xf32>
      %c0_51 = arith.constant 0 : index
      %c0_52 = arith.constant 0 : index
      %74 = vector.load %arg6[%c0_51, %c0_52] : memref<1x32xf32, #tpu.memory_space<vmem>>, vector<1x32xf32>
      tpu.vector_store %arg6[%c0_51, %c0_52], %73 {strides = array<i32>} : memref<1x32xf32, #tpu.memory_space<vmem>>, vector<1x32xf32>,
      %c0_i32_53 = arith.constant 0 : i32
      %c32_i32 = arith.constant 32 : i32
      %75 = arith.muli %c0_i32_53, %c32_i32 : i32
      %76 = tpu.assume_multiple %75, 32 : i32
      %c0_i32_54 = arith.constant 0 : i32
      %77 = tpu.memref_slice %arg3[%76, %c0_i32_54] : memref<32x128xf32, #tpu.memory_space<any>> -> memref<32x128xf32, #tpu.memory_space<any>>
      tpu.enqueue_dma source(%77 : memref<32x128xf32, #tpu.memory_space<any>>) target(%arg11 : memref<32x128xf32, #tpu.memory_space<vmem>>) target_semaphore(%arg12 : memref<!tpu.dma_semaphore, #tpu.memory_space<semaphore_mem>>)
      %c0_i32_55 = arith.constant 0 : i32
      %78 = tpu.memref_slice %arg3[%76, %c0_i32_55] : memref<32x128xf32, #tpu.memory_space<any>> -> memref<32x128xf32, #tpu.memory_space<any>>
      tpu.wait_dma2 semaphore(%arg12 : memref<!tpu.dma_semaphore, #tpu.memory_space<semaphore_mem>>) src(%78 : memref<32x128xf32, #tpu.memory_space<any>>) dst(%arg11 : memref<32x128xf32, #tpu.memory_space<vmem>>)
      %c0_56 = arith.constant 0 : index
      %c0_57 = arith.constant 0 : index
      %79 = vector.load %arg11[%c0_56, %c0_57] : memref<32x128xf32, #tpu.memory_space<vmem>>, vector<32x128xf32>
      %80 = arith.mulf %79, %79 : vector<32x128xf32>
      %cst_58 = arith.constant dense<0.000000e+00> : vector<32xf32>
      %81 = vector.multi_reduction <add>, %80, %cst_58 [1] : vector<32x128xf32> to vector<32xf32>
      %82 = vector.shape_cast %81 : vector<32xf32> to vector<32x1xf32>
      %83 = math.sqrt %82 : vector<32x1xf32>
      %cst_59 = arith.constant 9.99999993E-9 : f32
      %84 = vector.broadcast %cst_59 : f32 to vector<32x1xf32>
      %85 = arith.maximumf %83, %84 : vector<32x1xf32>
      %cst_60 = arith.constant 1.000000e+00 : f32
      %86 = vector.broadcast %cst_60 : f32 to vector<32x1xf32>
      %87 = arith.divf %86, %85 : vector<32x1xf32>
      %88 = vector.broadcast %87 : vector<32x1xf32> to vector<32x128xf32>
      %89 = arith.mulf %79, %88 : vector<32x128xf32>
      %90 = arith.truncf %89 : vector<32x128xf32> to vector<32x128xbf16>
      %91 = arith.index_cast %76 : i32 to index
      %c0_61 = arith.constant 0 : index
      %92 = vector.load %arg5[%91, %c0_61] : memref<32x128xbf16, #tpu.memory_space<vmem>>, vector<32x128xbf16>
      tpu.vector_store %arg5[%91, %c0_61], %90 {strides = array<i32>} : memref<32x128xbf16, #tpu.memory_space<vmem>>, vector<32x128xbf16>,
      %c1_i32 = arith.constant 1 : i32
    } else {
    }
    %c0 = arith.constant 0 : index
    %c0_1 = arith.constant 0 : index
    %3 = vector.load %arg1[%c0, %c0_1] : memref<32x128xf32, #tpu.memory_space<vmem>>, vector<32x128xf32>
    %c0_2 = arith.constant 0 : index
    %c0_3 = arith.constant 0 : index
    %4 = vector.load %arg2[%c0_2, %c0_3] : memref<32x128xf32, #tpu.memory_space<vmem>>, vector<32x128xf32>
    %5 = arith.subf %3, %4 : vector<32x128xf32>
    %c0_4 = arith.constant 0 : index
    %c0_5 = arith.constant 0 : index
    %6 = vector.load %arg8[%c0_4, %c0_5] : memref<1x128xf32, #tpu.memory_space<vmem>>, vector<1x128xf32>
    %7 = arith.mulf %5, %5 : vector<32x128xf32>
    %cst = arith.constant dense<0.000000e+00> : vector<128xf32>
    %8 = vector.multi_reduction <add>, %7, %cst [0] : vector<32x128xf32> to vector<128xf32>
    %9 = vector.shape_cast %8 : vector<128xf32> to vector<1x128xf32>
    %10 = arith.addf %6, %9 : vector<1x128xf32>
    %c0_6 = arith.constant 0 : index
    %c0_7 = arith.constant 0 : index
    %11 = vector.load %arg8[%c0_6, %c0_7] : memref<1x128xf32, #tpu.memory_space<vmem>>, vector<1x128xf32>
    tpu.vector_store %arg8[%c0_6, %c0_7], %10 {strides = array<i32>} : memref<1x128xf32, #tpu.memory_space<vmem>>, vector<1x128xf32>,
    %12 = arith.mulf %3, %3 : vector<32x128xf32>
    %cst_8 = arith.constant dense<0.000000e+00> : vector<32xf32>
    %13 = vector.multi_reduction <add>, %12, %cst_8 [1] : vector<32x128xf32> to vector<32xf32>
    %14 = vector.shape_cast %13 : vector<32xf32> to vector<32x1xf32>
    %15 = math.sqrt %14 : vector<32x1xf32>
    %16 = arith.mulf %4, %4 : vector<32x128xf32>
    %cst_9 = arith.constant dense<0.000000e+00> : vector<32xf32>
    %17 = vector.multi_reduction <add>, %16, %cst_9 [1] : vector<32x128xf32> to vector<32xf32>
    %18 = vector.shape_cast %17 : vector<32xf32> to vector<32x1xf32>
    %19 = math.sqrt %18 : vector<32x1xf32>
    %cst_10 = arith.constant 9.99999993E-9 : f32
    %20 = vector.broadcast %cst_10 : f32 to vector<32x1xf32>
    %21 = arith.maximumf %15, %20 : vector<32x1xf32>
    %cst_11 = arith.constant 1.000000e+00 : f32
    %22 = vector.broadcast %cst_11 : f32 to vector<32x1xf32>
    %23 = arith.divf %22, %21 : vector<32x1xf32>
    %24 = vector.broadcast %23 : vector<32x1xf32> to vector<32x128xf32>
    %25 = arith.mulf %3, %24 : vector<32x128xf32>
    %cst_12 = arith.constant 9.99999993E-9 : f32
    %26 = vector.broadcast %cst_12 : f32 to vector<32x1xf32>
    %27 = arith.maximumf %19, %26 : vector<32x1xf32>
    %cst_13 = arith.constant 1.000000e+00 : f32
    %28 = vector.broadcast %cst_13 : f32 to vector<32x1xf32>
    %29 = arith.divf %28, %27 : vector<32x1xf32>
    %30 = vector.broadcast %29 : vector<32x1xf32> to vector<32x128xf32>
    %31 = arith.mulf %4, %30 : vector<32x128xf32>
    %32 = arith.mulf %25, %31 : vector<32x128xf32>
    %cst_14 = arith.constant dense<0.000000e+00> : vector<32xf32>
    %33 = vector.multi_reduction <add>, %32, %cst_14 [1] : vector<32x128xf32> to vector<32xf32>
    %34 = vector.shape_cast %33 : vector<32xf32> to vector<32x1xf32>
    %c0_15 = arith.constant 0 : index
    %c0_16 = arith.constant 0 : index
    %35 = vector.load %arg9[%c0_15, %c0_16] : memref<32x1xf32, #tpu.memory_space<vmem>>, vector<32x1xf32>
    %36 = arith.addf %35, %34 : vector<32x1xf32>
    %c0_17 = arith.constant 0 : index
    %c0_18 = arith.constant 0 : index
    %37 = vector.load %arg9[%c0_17, %c0_18] : memref<32x1xf32, #tpu.memory_space<vmem>>, vector<32x1xf32>
    tpu.vector_store %arg9[%c0_17, %c0_18], %36 {strides = array<i32>} : memref<32x1xf32, #tpu.memory_space<vmem>>, vector<32x1xf32>,
    %38 = arith.truncf %25 : vector<32x128xf32> to vector<32x128xbf16>
    %c0_19 = arith.constant 0 : index
    %c0_20 = arith.constant 0 : index
    %39 = vector.load %arg5[%c0_19, %c0_20] : memref<32x128xbf16, #tpu.memory_space<vmem>>, vector<32x128xbf16>
    %cst_21 = arith.constant dense<0.000000e+00> : vector<32x32xf32>
    %40 = tpu.matmul %38, %39, %cst_21 {dimension_numbers = #tpu.dot_dimension_numbers<[1], [1], [0], [0], [0, 0, 1, 0], [], []>} : vector<32x128xbf16>, vector<32x128xbf16>, vector<32x32xf32> -> vector<32x32xf32>
    %cst_22 = arith.constant 2.000000e+00 : f32
    %41 = vector.broadcast %cst_22 : f32 to vector<32x32xf32>
    %42 = arith.mulf %40, %41 : vector<32x32xf32>
    %cst_23 = arith.constant 2.000000e+00 : f32
    %43 = vector.broadcast %cst_23 : f32 to vector<32x32xf32>
    %44 = arith.subf %42, %43 : vector<32x32xf32>
    %45 = math.exp %44 : vector<32x32xf32>
    %cst_24 = arith.constant dense<0.000000e+00> : vector<32xf32>
    %46 = vector.multi_reduction <add>, %45, %cst_24 [1] : vector<32x32xf32> to vector<32xf32>
    %47 = vector.shape_cast %46 : vector<32xf32> to vector<32x1xf32>
    %48 = math.log %47 : vector<32x1xf32>
    %cst_25 = arith.constant 2.000000e+00 : f32
    %49 = vector.broadcast %cst_25 : f32 to vector<32x1xf32>
    %50 = arith.addf %49, %48 : vector<32x1xf32>
    %c0_26 = arith.constant 0 : index
    %c0_27 = arith.constant 0 : index
    %51 = vector.load %arg7[%c0_26, %c0_27] : memref<1x32xf32, #tpu.memory_space<vmem>>, vector<1x32xf32>
    %cst_28 = arith.constant dense<0.000000e+00> : vector<32xf32>
    %52 = vector.multi_reduction <add>, %45, %cst_28 [0] : vector<32x32xf32> to vector<32xf32>
    %53 = vector.shape_cast %52 : vector<32xf32> to vector<1x32xf32>
    %54 = arith.addf %51, %53 : vector<1x32xf32>
    %c0_29 = arith.constant 0 : index
    %c0_30 = arith.constant 0 : index
    %55 = vector.load %arg7[%c0_29, %c0_30] : memref<1x32xf32, #tpu.memory_space<vmem>>, vector<1x32xf32>
    tpu.vector_store %arg7[%c0_29, %c0_30], %54 {strides = array<i32>} : memref<1x32xf32, #tpu.memory_space<vmem>>, vector<1x32xf32>,
    %c0_31 = arith.constant 0 : index
    %c0_32 = arith.constant 0 : index
    %56 = vector.load %arg10[%c0_31, %c0_32] : memref<32x1xf32, #tpu.memory_space<vmem>>, vector<32x1xf32>
    %cst_33 = arith.constant 2.000000e+00 : f32
    %57 = vector.broadcast %cst_33 : f32 to vector<32x1xf32>
    %58 = arith.mulf %34, %57 : vector<32x1xf32>
    %59 = arith.subf %58, %50 : vector<32x1xf32>
    %60 = arith.addf %56, %59 : vector<32x1xf32>
    %c0_34 = arith.constant 0 : index
    %c0_35 = arith.constant 0 : index
    %61 = vector.load %arg10[%c0_34, %c0_35] : memref<32x1xf32, #tpu.memory_space<vmem>>, vector<32x1xf32>
    tpu.vector_store %arg10[%c0_34, %c0_35], %60 {strides = array<i32>} : memref<32x1xf32, #tpu.memory_space<vmem>>, vector<32x1xf32>,
    %c0_i32_36 = arith.constant 0 : i32
    %62 = arith.cmpi eq, %arg0, %c0_i32_36 : i32
    %63 = arith.extui %62 : i1 to i32
    %c0_i32_37 = arith.constant 0 : i32
    %64 = arith.cmpi ne, %63, %c0_i32_37 : i32
    scf.if %64 {
      %c0_38 = arith.constant 0 : index
      %c0_39 = arith.constant 0 : index
      %65 = vector.load %arg8[%c0_38, %c0_39] : memref<1x128xf32, #tpu.memory_space<vmem>>, vector<1x128xf32>
      %66 = vector.shape_cast %65 : vector<1x128xf32> to vector<1x1x128xf32>
      %cst_40 = arith.constant dense<0.000000e+00> : vector<1xf32>
      %67 = vector.multi_reduction <add>, %66, %cst_40 [1, 2] : vector<1x1x128xf32> to vector<1xf32>
      %68 = vector.shape_cast %67 : vector<1xf32> to vector<1x1x1xf32>
      %69 = vector.extract %68[0, 0, 0] : f32 from vector<1x1x1xf32>
      %cst_41 = arith.constant 2.44140625E-4 : f32
      %70 = arith.mulf %69, %cst_41 : f32
      %c0_42 = arith.constant 0 : index
      %c0_43 = arith.constant 0 : index
      %71 = vector.load %arg9[%c0_42, %c0_43] : memref<32x1xf32, #tpu.memory_space<vmem>>, vector<32x1xf32>
      %72 = vector.shape_cast %71 : vector<32x1xf32> to vector<1x32x1xf32>
      %cst_44 = arith.constant dense<0.000000e+00> : vector<1xf32>
      %73 = vector.multi_reduction <add>, %72, %cst_44 [1, 2] : vector<1x32x1xf32> to vector<1xf32>
      %74 = vector.shape_cast %73 : vector<1xf32> to vector<1x1x1xf32>
      %75 = vector.extract %74[0, 0, 0] : f32 from vector<1x1x1xf32>
      %cst_45 = arith.constant 3.125000e-02 : f32
      %76 = arith.mulf %75, %cst_45 : f32
      %cst_46 = arith.constant 1.000000e+00 : f32
      %77 = arith.subf %cst_46, %76 : f32
      %cst_47 = arith.constant 5.000000e-01 : f32
      %78 = arith.mulf %cst_47, %70 : f32
      %cst_48 = arith.constant 5.000000e-01 : f32
      %79 = arith.mulf %cst_48, %77 : f32
      %80 = arith.addf %78, %79 : f32
      %c0_49 = arith.constant 0 : index
      %c0_50 = arith.constant 0 : index
      %81 = vector.load %arg7[%c0_49, %c0_50] : memref<1x32xf32, #tpu.memory_space<vmem>>, vector<1x32xf32>
      %82 = math.log %81 : vector<1x32xf32>
      %cst_51 = arith.constant 2.000000e+00 : f32
      %83 = vector.broadcast %cst_51 : f32 to vector<1x32xf32>
      %84 = arith.addf %83, %82 : vector<1x32xf32>
      %cst_52 = arith.constant 2.000000e+00 : f32
      %85 = arith.mulf %75, %cst_52 : f32
      %86 = vector.shape_cast %84 : vector<1x32xf32> to vector<1x1x32xf32>
      %cst_53 = arith.constant dense<0.000000e+00> : vector<1xf32>
      %87 = vector.multi_reduction <add>, %86, %cst_53 [1, 2] : vector<1x1x32xf32> to vector<1xf32>
      %88 = vector.shape_cast %87 : vector<1xf32> to vector<1x1x1xf32>
      %89 = vector.extract %88[0, 0, 0] : f32 from vector<1x1x1xf32>
      %90 = arith.subf %85, %89 : f32
      %c0_54 = arith.constant 0 : index
      %c0_55 = arith.constant 0 : index
      %91 = vector.load %arg10[%c0_54, %c0_55] : memref<32x1xf32, #tpu.memory_space<vmem>>, vector<32x1xf32>
      %92 = vector.shape_cast %91 : vector<32x1xf32> to vector<1x32x1xf32>
      %cst_56 = arith.constant dense<0.000000e+00> : vector<1xf32>
      %93 = vector.multi_reduction <add>, %92, %cst_56 [1, 2] : vector<1x32x1xf32> to vector<1xf32>
      %94 = vector.shape_cast %93 : vector<1xf32> to vector<1x1x1xf32>
      %95 = vector.extract %94[0, 0, 0] : f32 from vector<1x1x1xf32>
      %cst_57 = arith.constant 5.000000e-01 : f32
      %96 = arith.mulf %cst_57, %95 : f32
      %cst_58 = arith.constant 5.000000e-01 : f32
      %97 = arith.mulf %cst_58, %90 : f32
      %98 = arith.addf %96, %97 : f32
      %cst_59 = arith.constant 0.000000e+00 : f32
      %99 = arith.subf %cst_59, %98 : f32
      %cst_60 = arith.constant 3.125000e-02 : f32
      %100 = arith.mulf %99, %cst_60 : f32
      %cst_61 = arith.constant 5.000000e-01 : f32
      %101 = arith.mulf %cst_61, %80 : f32
      %cst_62 = arith.constant 5.000000e-01 : f32
      %102 = arith.mulf %cst_62, %100 : f32
      %103 = arith.addf %101, %102 : f32
      %104 = vector.broadcast %103 : f32 to vector<1x1xf32>
      %c0_63 = arith.constant 0 : index
      %c0_64 = arith.constant 0 : index
      %105 = vector.load %arg4[%c0_63, %c0_64] : memref<1x1xf32, #tpu.memory_space<vmem>>, vector<1x1xf32>
      tpu.vector_store %arg4[%c0_63, %c0_64], %104 {strides = array<i32>} : memref<1x1xf32, #tpu.memory_space<vmem>>, vector<1x1xf32>,
    } else {
    }
    return
  }
  func.func @transform_0(%arg0: i32) -> (i32, i32) {
    %c0_i32 = arith.constant 0 : i32
    %c0_i32_0 = arith.constant 0 : i32
    return %arg0, %c0_i32 : i32, i32
  }
  func.func @transform_1(%arg0: i32) -> (i32, i32) {
    %c0_i32 = arith.constant 0 : i32
    %c0_i32_0 = arith.constant 0 : i32
    return %arg0, %c0_i32 : i32, i32
  }
  func.func @transform_3(%arg0: i32) -> (i32, i32) {
    %c0_i32 = arith.constant 0 : i32
    %c0_i32_0 = arith.constant 0 : i32
    %c0_i32_1 = arith.constant 0 : i32
    return %c0_i32, %c0_i32_0 : i32, i32
  }
}

</mosaic_0001>

<llo_original>
// kernel: tpu_custom_call.1
$region0: #{tpu_custom_call.1}
  #allocation0 [shape = 'u32[]', space=smem, size = 0x4, offset = 0x4, fixed_abs, tag = 'smem constant byte address 0x4 - core index']
  #allocation1 [shape = 'u32[144,128]{1,0:T(1,128)}', space=vmem, size = 0x12000, scoped, tag = 'internal scratch']
  #allocation2 [shape = 'bf16[32,128]{1,0:T(8,128)(2,1)}', space=vmem, size = 0x2000, scoped, tag = 'scratch operand']
  #allocation3 [shape = 'f32[1,32]{1,0:T(1,128)}', space=vmem, size = 0x200, scoped, tag = 'scratch operand']
  #allocation4 [shape = 'f32[1,32]{1,0:T(1,128)}', space=vmem, size = 0x200, scoped, tag = 'scratch operand']
  #allocation5 [shape = 'f32[1,128]{1,0:T(1,128)}', space=vmem, size = 0x200, scoped, tag = 'scratch operand']
  #allocation6 [shape = 'f32[32,1]{1,0:T(8,128)}', space=vmem, size = 0x4000, scoped, tag = 'scratch operand']
  #allocation7 [shape = 'f32[32,1]{1,0:T(8,128)}', space=vmem, size = 0x4000, scoped, tag = 'scratch operand']
  #allocation8 [shape = 'f32[32,128]{1,0:T(8,128)}', space=vmem, size = 0x4000, scoped, tag = 'scratch operand']
  #allocation9 [shape = 's32[1]{0}', space=sflag, size = 0x4, scoped, tag = 'scratch operand']
  #allocation16 [shape = 's32[]', space=sflag, size = 0x4, offset = 0, fixed_abs, tag = 'sflag constant byte address 0x0 - dummy sync flag']
  #allocation17 [shape = 's32[]', space=sflag, size = 0x4, offset = 0, fixed_abs, tag = 'sflag constant byte address 0x0 - dummy sync flag']
  #allocation18 [shape = 'u32[]', space=smem, size = 0x4, offset = 0x44, fixed_abs, tag = 'smem constant byte address 0x44 - assertion arg 0']
  #allocation19 [shape = 'u32[]', space=smem, size = 0x4, offset = 0x48, fixed_abs, tag = 'smem constant byte address 0x48 - assertion arg 1']
  %s0 = inlined_call_operand.hbm [shape: f32[32,128], index: 0, kind: input, shape index: {}]
  %s1 = inlined_call_operand.hbm [shape: f32[32,128], index: 1, kind: input, shape index: {}]
  %s2 = inlined_call_operand.hbm [shape: f32[32,128], index: 2, kind: input, shape index: {}]
  %s3 = inlined_call_operand.hbm [shape: f32[1,1], index: 3, kind: output, shape index: {}]
  %s4 = sld [smem:[#allocation0]]
  $region38: #{tpu_custom_call.1} parent=0
    _
  %s6 = ssub.s32 1, %s4
  %s7 = scalar_select 0, %s6, %s4
  $region1: #{tpu_custom_call.1} parent=0
    #allocation10 [shape = 'u8[16384]{0}', space=vmem, size = 0x4000, scoped, tag = 'input window, operand 0, single buffered']
    #allocation11 [shape = 's32[1]{0}', space=sflag, size = 0x4, scoped, tag = 'scoped memory for tpu_custom_call.1']
    #allocation12 [shape = 's32[1]{0}', space=sflag, size = 0x4, scoped, tag = 'scoped memory for tpu_custom_call.1']
    #allocation13 [shape = 'u8[16384]{0}', space=vmem, size = 0x4000, scoped, tag = 'input window, operand 1, single buffered']
    #allocation14 [shape = 's32[1]{0}', space=sflag, size = 0x4, scoped, tag = 'scoped memory for tpu_custom_call.1']
    #allocation15 [shape = 'u8[512]{0}', space=vmem, size = 0x400, scoped, tag = 'output window, operand 0, single buffered']
    %8 = vsyncpa [#allocation11], 0
    %9 = vsyncpa [#allocation14], 0
    %10 = vsyncpa [#allocation12], 0
    // Predicated region
    $region2: #{tpu_custom_call.1} parent=1 // pred_check
      _
    $region3: #{tpu_custom_call.1} parent=1 // pred_check_branch
      %12 = sbr.rel (0) target = $region5
    $region4: #{tpu_custom_call.1} parent=1 // pred_region
      %s14 = ssub.s32 512, 512
      %15 = vsyncadd [#allocation11], %s14
      %s16 = sshll.u32 [#allocation10], 4
      %s17 = int_to_ptr.vmem [resolvable:$true] %s16
      %22 = dma.hbm_to_vmem [thread:$0]  %s0, 512, %s17, [#allocation11], 128, 128, 8
    $region5: #{tpu_custom_call.1} parent=1 // pred_fallthru
      _
    // Predicated region
    $region6: #{tpu_custom_call.1} parent=1 // pred_check
      _
    $region7: #{tpu_custom_call.1} parent=1 // pred_check_branch
      %24 = sbr.rel (0) target = $region9
    $region8: #{tpu_custom_call.1} parent=1 // pred_region
      %s26 = ssub.s32 512, 512
      %27 = vsyncadd [#allocation14], %s26
      %s28 = sshll.u32 [#allocation13], 4
      %s29 = int_to_ptr.vmem [resolvable:$true] %s28
      %34 = dma.hbm_to_vmem [thread:$0]  %s1, 512, %s29, [#allocation14], 128, 128, 8
    $region9: #{tpu_custom_call.1} parent=1 // pred_fallthru
      _
    // Predicated region
    $region10: #{tpu_custom_call.1} parent=1 // pred_check
      _
    $region11: #{tpu_custom_call.1} parent=1 // pred_check_branch
      %36 = sbr.rel (0) target = $region13
    $region12: #{tpu_custom_call.1} parent=1 // pred_region
      %37 = dma.done [#allocation11], 512
    $region13: #{tpu_custom_call.1} parent=1 // pred_fallthru
      _
    // Predicated region
    $region14: #{tpu_custom_call.1} parent=1 // pred_check
      _
    $region15: #{tpu_custom_call.1} parent=1 // pred_check_branch
      %39 = sbr.rel (0) target = $region17
    $region16: #{tpu_custom_call.1} parent=1 // pred_region
      %40 = dma.done [#allocation14], 512
    $region17: #{tpu_custom_call.1} parent=1 // pred_fallthru
      _
    %p42 = scmp.eq.s32.totalorder 0, 0
    // Predicated region
    $region18: #{tpu_custom_call.1} parent=1 // pred_check
      %p43 = pneg %p42
    $region19: #{tpu_custom_call.1} parent=1 // pred_check_branch
      %45 = sbr.rel (%p43) target = $region21
    $region20: #{tpu_custom_call.1} parent=1 // pred_region
      %46 = vst [vmem:[#allocation5] sm:$0x1] 0.0
      %vm47 = vcmask 7168
      %48 = vst.msk [vmem:[#allocation6] sm:$0xff] %vm47, 0.0
      %49 = vst.msk [vmem:[#allocation6 + $0x8] sm:$0xff] %vm47, 0.0
      %50 = vst.msk [vmem:[#allocation6 + $0x10] sm:$0xff] %vm47, 0.0
      %51 = vst.msk [vmem:[#allocation6 + $0x18] sm:$0xff] %vm47, 0.0
      %52 = vst.msk [vmem:[#allocation7] sm:$0xff] %vm47, 0.0
      %53 = vst.msk [vmem:[#allocation7 + $0x8] sm:$0xff] %vm47, 0.0
      %54 = vst.msk [vmem:[#allocation7 + $0x10] sm:$0xff] %vm47, 0.0
      %55 = vst.msk [vmem:[#allocation7 + $0x18] sm:$0xff] %vm47, 0.0
      %vm56 = vcmask 253952
      %57 = vst.msk [vmem:[#allocation4] sm:$0x1] %vm56, 0.0
      %58 = vst.msk [vmem:[#allocation3] sm:$0x1] %vm56, 0.0
      // Predicated region
      $region22: #{tpu_custom_call.1} parent=20 // pred_check
        _
      $region23: #{tpu_custom_call.1} parent=20 // pred_check_branch
        %60 = sbr.rel target = $region25
      $region24: #{tpu_custom_call.1} parent=20 // pred_region
        %61 = sst [smem:[#allocation18]] [#allocation17]
        %62 = sst [smem:[#allocation19]] [#allocation16]
      $region25: #{tpu_custom_call.1} parent=20 // pred_fallthru
        _
      %64 = shalt.err (0)
      %s66 = sshll.u32 [#allocation8], 4
      %s67 = int_to_ptr.vmem [resolvable:$true] %s66
      %69 = dma.hbm_to_vmem [thread:$0]  %s2, 512, %s67, [#allocation9]
      %s70 = smul.u32 32, 1
      %s71 = sshll.u32 %s70, 4
      %72 = dma.done [#allocation9], %s71
      %v73 = vld [vmem:[#allocation8] sm:$0xff]
      %v74 = vld [vmem:[#allocation8 + $0x8] sm:$0xff]
      %v75 = vld [vmem:[#allocation8 + $0x10] sm:$0xff]
      %v76 = vld [vmem:[#allocation8 + $0x18] sm:$0xff]
      %v77 = vmul.f32 %v73, %v73
      %v78 = vmul.f32 %v74, %v74
      %v79 = vmul.f32 %v75, %v75
      %v80 = vmul.f32 %v76, %v76
      %81 = vadd.xlane.f32.xlu0 %v77
      %v82 = vpop.xlane.xlu0 %81
      %83 = vadd.xlane.f32.xlu0 %v78
      %v84 = vpop.xlane.xlu0 %83
      %85 = vadd.xlane.f32.xlu0 %v79
      %v86 = vpop.xlane.xlu0 %85
      %87 = vadd.xlane.f32.xlu0 %v80
      %v88 = vpop.xlane.xlu0 %87
      %v89 = vrsqrt.pop %v82
      %v90 = vmul.f32 %v82, %v89
      %vm91 = vcmp.eq.f32.partialorder %v82, inf
      %v92 = vsel %vm91, %v82, %v90
      %vm93 = vcmp.eq.f32.partialorder %v82, 0.0
      %v94 = vand.u32 %v82, 2147483648
      %v95 = vsel %vm93, %v94, %v92
      %v96 = vrsqrt.pop %v84
      %v97 = vmul.f32 %v84, %v96
      %vm98 = vcmp.eq.f32.partialorder %v84, inf
      %v99 = vsel %vm98, %v84, %v97
      %vm100 = vcmp.eq.f32.partialorder %v84, 0.0
      %v101 = vand.u32 %v84, 2147483648
      %v102 = vsel %vm100, %v101, %v99
      %v103 = vrsqrt.pop %v86
      %v104 = vmul.f32 %v86, %v103
      %vm105 = vcmp.eq.f32.partialorder %v86, inf
      %v106 = vsel %vm105, %v86, %v104
      %vm107 = vcmp.eq.f32.partialorder %v86, 0.0
      %v108 = vand.u32 %v86, 2147483648
      %v109 = vsel %vm107, %v108, %v106
      %v110 = vrsqrt.pop %v88
      %v111 = vmul.f32 %v88, %v110
      %vm112 = vcmp.eq.f32.partialorder %v88, inf
      %v113 = vsel %vm112, %v88, %v111
      %vm114 = vcmp.eq.f32.partialorder %v88, 0.0
      %v115 = vand.u32 %v88, 2147483648
      %v116 = vsel %vm114, %v115, %v113
      %v117 = vmax.f32 %v95, 1e-08
      %v118 = vmax.f32 %v102, 1e-08
      %v119 = vmax.f32 %v109, 1e-08
      %v120 = vmax.f32 %v116, 1e-08
      %v121 = vrcp.pop %v117
      %v122 = vmul.f32 1.0, %v121
      %v123 = vrcp.pop %v118
      %v124 = vmul.f32 1.0, %v123
      %v125 = vrcp.pop %v119
      %v126 = vmul.f32 1.0, %v125
      %v127 = vrcp.pop %v120
      %v128 = vmul.f32 1.0, %v127
      %v129 = vmul.f32 %v73, %v122
      %v130 = vmul.f32 %v74, %v124
      %v131 = vmul.f32 %v75, %v126
      %v132 = vmul.f32 %v76, %v128
      %v133 = vpack.c.bf16 %v130, %v129
      %v134 = vpack.c.bf16 %v132, %v131
      %v137 = vunpack.c.l.b16 %v133
      %v138 = vunpack.c.h.b16 %v133
      %v139 = vunpack.c.l.b16 %v134
      %v140 = vunpack.c.h.b16 %v134
      %v141 = vpack.c.b16 %v137, %v137
      %v142 = vpack.c.b16 %v138, %v138
      %v143 = vpack.c.b16 %v139, %v139
      %v144 = vpack.c.b16 %v140, %v140
      %149 = vst [vmem:[#allocation2] sm:$0xf] %v141
      %150 = vst [vmem:[#allocation2 + $0x4] sm:$0xf] %v142
      %151 = vst [vmem:[#allocation2 + $0x8] sm:$0xf] %v143
      %152 = vst [vmem:[#allocation2 + $0xc] sm:$0xf] %v144
    $region21: #{tpu_custom_call.1} parent=1 // pred_fallthru
      _
    %v153 = vld [vmem:[#allocation10] sm:$0xff]
    %v154 = vld [vmem:[#allocation10 + $0x8] sm:$0xff]
    %v155 = vld [vmem:[#allocation10 + $0x10] sm:$0xff]
    %v156 = vld [vmem:[#allocation10 + $0x18] sm:$0xff]
    %v157 = vld [vmem:[#allocation13] sm:$0xff]
    %v158 = vld [vmem:[#allocation13 + $0x8] sm:$0xff]
    %v159 = vld [vmem:[#allocation13 + $0x10] sm:$0xff]
    %v160 = vld [vmem:[#allocation13 + $0x18] sm:$0xff]
    %v161 = vsub.f32 %v153, %v157
    %v162 = vsub.f32 %v154, %v158
    %v163 = vsub.f32 %v155, %v159
    %v164 = vsub.f32 %v156, %v160
    %v165 = vld [vmem:[#allocation5] sm:$0x1]
    %v166 = vmul.f32 %v161, %v161
    %v167 = vmul.f32 %v162, %v162
    %v168 = vmul.f32 %v163, %v163
    %v169 = vmul.f32 %v164, %v164
    %v170 = vadd.f32 %v166, %v167
    %v171 = vadd.f32 %v170, %v168
    %v172 = vadd.f32 %v171, %v169
    %v173 = vrot.slane %v172, 4
    %v174 = vadd.f32 %v172, %v173
    %v175 = vrot.slane %v174, 2
    %v176 = vadd.f32 %v174, %v175
    %v177 = vrot.slane %v176, 1
    %v178 = vadd.f32 %v176, %v177
    %v179 = vadd.f32 %v165, %v178
    %180 = vst [vmem:[#allocation5] sm:$0x1] %v179
    %v181 = vmul.f32 %v153, %v153
    %v182 = vmul.f32 %v154, %v154
    %v183 = vmul.f32 %v155, %v155
    %v184 = vmul.f32 %v156, %v156
    %185 = vadd.xlane.f32.xlu0 %v181
    %v186 = vpop.xlane.xlu0 %185
    %187 = vadd.xlane.f32.xlu0 %v182
    %v188 = vpop.xlane.xlu0 %187
    %189 = vadd.xlane.f32.xlu0 %v183
    %v190 = vpop.xlane.xlu0 %189
    %191 = vadd.xlane.f32.xlu0 %v184
    %v192 = vpop.xlane.xlu0 %191
    %v193 = vrsqrt.pop %v186
    %v194 = vmul.f32 %v186, %v193
    %vm195 = vcmp.eq.f32.partialorder %v186, inf
    %v196 = vsel %vm195, %v186, %v194
    %vm197 = vcmp.eq.f32.partialorder %v186, 0.0
    %v198 = vand.u32 %v186, 2147483648
    %v199 = vsel %vm197, %v198, %v196
    %v200 = vrsqrt.pop %v188
    %v201 = vmul.f32 %v188, %v200
    %vm202 = vcmp.eq.f32.partialorder %v188, inf
    %v203 = vsel %vm202, %v188, %v201
    %vm204 = vcmp.eq.f32.partialorder %v188, 0.0
    %v205 = vand.u32 %v188, 2147483648
    %v206 = vsel %vm204, %v205, %v203
    %v207 = vrsqrt.pop %v190
    %v208 = vmul.f32 %v190, %v207
    %vm209 = vcmp.eq.f32.partialorder %v190, inf
    %v210 = vsel %vm209, %v190, %v208
    %vm211 = vcmp.eq.f32.partialorder %v190, 0.0
    %v212 = vand.u32 %v190, 2147483648
    %v213 = vsel %vm211, %v212, %v210
    %v214 = vrsqrt.pop %v192
    %v215 = vmul.f32 %v192, %v214
    %vm216 = vcmp.eq.f32.partialorder %v192, inf
    %v217 = vsel %vm216, %v192, %v215
    %vm218 = vcmp.eq.f32.partialorder %v192, 0.0
    %v219 = vand.u32 %v192, 2147483648
    %v220 = vsel %vm218, %v219, %v217
    %v221 = vmul.f32 %v157, %v157
    %v222 = vmul.f32 %v158, %v158
    %v223 = vmul.f32 %v159, %v159
    %v224 = vmul.f32 %v160, %v160
    %225 = vadd.xlane.f32.xlu0 %v221
    %v226 = vpop.xlane.xlu0 %225
    %227 = vadd.xlane.f32.xlu0 %v222
    %v228 = vpop.xlane.xlu0 %227
    %229 = vadd.xlane.f32.xlu0 %v223
    %v230 = vpop.xlane.xlu0 %229
    %231 = vadd.xlane.f32.xlu0 %v224
    %v232 = vpop.xlane.xlu0 %231
    %v233 = vrsqrt.pop %v226
    %v234 = vmul.f32 %v226, %v233
    %vm235 = vcmp.eq.f32.partialorder %v226, inf
    %v236 = vsel %vm235, %v226, %v234
    %vm237 = vcmp.eq.f32.partialorder %v226, 0.0
    %v238 = vand.u32 %v226, 2147483648
    %v239 = vsel %vm237, %v238, %v236
    %v240 = vrsqrt.pop %v228
    %v241 = vmul.f32 %v228, %v240
    %vm242 = vcmp.eq.f32.partialorder %v228, inf
    %v243 = vsel %vm242, %v228, %v241
    %vm244 = vcmp.eq.f32.partialorder %v228, 0.0
    %v245 = vand.u32 %v228, 2147483648
    %v246 = vsel %vm244, %v245, %v243
    %v247 = vrsqrt.pop %v230
    %v248 = vmul.f32 %v230, %v247
    %vm249 = vcmp.eq.f32.partialorder %v230, inf
    %v250 = vsel %vm249, %v230, %v248
    %vm251 = vcmp.eq.f32.partialorder %v230, 0.0
    %v252 = vand.u32 %v230, 2147483648
    %v253 = vsel %vm251, %v252, %v250
    %v254 = vrsqrt.pop %v232
    %v255 = vmul.f32 %v232, %v254
    %vm256 = vcmp.eq.f32.partialorder %v232, inf
    %v257 = vsel %vm256, %v232, %v255
    %vm258 = vcmp.eq.f32.partialorder %v232, 0.0
    %v259 = vand.u32 %v232, 2147483648
    %v260 = vsel %vm258, %v259, %v257
    %v261 = vmax.f32 %v199, 1e-08
    %v262 = vmax.f32 %v206, 1e-08
    %v263 = vmax.f32 %v213, 1e-08
    %v264 = vmax.f32 %v220, 1e-08
    %v265 = vrcp.pop %v261
    %v266 = vmul.f32 1.0, %v265
    %v267 = vrcp.pop %v262
    %v268 = vmul.f32 1.0, %v267
    %v269 = vrcp.pop %v263
    %v270 = vmul.f32 1.0, %v269
    %v271 = vrcp.pop %v264
    %v272 = vmul.f32 1.0, %v271
    %v273 = vmul.f32 %v153, %v266
    %v274 = vmul.f32 %v154, %v268
    %v275 = vmul.f32 %v155, %v270
    %v276 = vmul.f32 %v156, %v272
    %v277 = vmax.f32 %v239, 1e-08
    %v278 = vmax.f32 %v246, 1e-08
    %v279 = vmax.f32 %v253, 1e-08
    %v280 = vmax.f32 %v260, 1e-08
    %v281 = vrcp.pop %v277
    %v282 = vmul.f32 1.0, %v281
    %v283 = vrcp.pop %v278
    %v284 = vmul.f32 1.0, %v283
    %v285 = vrcp.pop %v279
    %v286 = vmul.f32 1.0, %v285
    %v287 = vrcp.pop %v280
    %v288 = vmul.f32 1.0, %v287
    %v289 = vmul.f32 %v157, %v282
    %v290 = vmul.f32 %v158, %v284
    %v291 = vmul.f32 %v159, %v286
    %v292 = vmul.f32 %v160, %v288
    %v293 = vmul.f32 %v273, %v289
    %v294 = vmul.f32 %v274, %v290
    %v295 = vmul.f32 %v275, %v291
    %v296 = vmul.f32 %v276, %v292
    %297 = vadd.xlane.f32.xlu0 %v293
    %v298 = vpop.xlane.xlu0 %297
    %299 = vadd.xlane.f32.xlu0 %v294
    %v300 = vpop.xlane.xlu0 %299
    %301 = vadd.xlane.f32.xlu0 %v295
    %v302 = vpop.xlane.xlu0 %301
    %303 = vadd.xlane.f32.xlu0 %v296
    %v304 = vpop.xlane.xlu0 %303
    %v305 = vld [vmem:[#allocation6] sm:$0xff]
    %v306 = vld [vmem:[#allocation6 + $0x8] sm:$0xff]
    %v307 = vld [vmem:[#allocation6 + $0x10] sm:$0xff]
    %v308 = vld [vmem:[#allocation6 + $0x18] sm:$0xff]
    %v309 = vadd.f32 %v305, %v298
    %v310 = vadd.f32 %v306, %v300
    %v311 = vadd.f32 %v307, %v302
    %v312 = vadd.f32 %v308, %v304
    %vm313 = vcmask 7168
    %314 = vst.msk [vmem:[#allocation6] sm:$0xff] %vm313, %v309
    %315 = vst.msk [vmem:[#allocation6 + $0x8] sm:$0xff] %vm313, %v310
    %316 = vst.msk [vmem:[#allocation6 + $0x10] sm:$0xff] %vm313, %v311
    %317 = vst.msk [vmem:[#allocation6 + $0x18] sm:$0xff] %vm313, %v312
    %v318 = vpack.c.bf16 %v274, %v273
    %v319 = vpack.c.bf16 %v276, %v275
    %v320 = vld [vmem:[#allocation2] sm:$0xf]
    %v321 = vld [vmem:[#allocation2 + $0x4] sm:$0xf]
    %v322 = vld [vmem:[#allocation2 + $0x8] sm:$0xf]
    %v323 = vld [vmem:[#allocation2 + $0xc] sm:$0xf]
    %v328 = vunpack.c.l.b16 %v320
    %v329 = vunpack.c.l.b16 %v321
    %v330 = vunpack.c.l.b16 %v322
    %v331 = vunpack.c.l.b16 %v323
    %v332 = vpack.c.b16 %v329, %v328
    %v333 = vpack.c.b16 %v331, %v330
    %336 = vmatprep.subr.bf16.mxu0 0
    %337 = vmatpush1.bf16.xpose.msra.mxu0 0
    %338 = vmatprep.subr.bf16.mxu0 0
    %339 = vmatpush1.bf16.xpose.msra.mxu0 0
    %340 = vmatprep.subr.bf16.mxu0 0
    %341 = vmatpush1.bf16.xpose.msra.mxu0 0
    %342 = vmatprep.subr.bf16.mxu0 0
    %343 = vmatpush1.bf16.xpose.msra.mxu0 0
    %344 = vmatprep.subr.bf16.mxu0 0
    %345 = vmatpush1.bf16.xpose.msra.mxu0 0
    %346 = vmatprep.subr.bf16.mxu0 0
    %347 = vmatpush1.bf16.xpose.msra.mxu0 0
    %348 = vmatprep.subr.bf16.mxu0 0
    %349 = vmatpush1.bf16.xpose.msra.mxu0 %v333
    %350 = vmatprep.subr.bf16.mxu0 0
    %351 = vmatpush1.bf16.xpose.msra.mxu0 %v332
    %352 = vmatprep.subr.bf16.mxu0 0
    %353 = vmatpush2.bf16.xpose.msra.mxu0 0
    %354 = vmatprep.subr.bf16.mxu0 0
    %355 = vmatpush2.bf16.xpose.msra.mxu0 0
    %356 = vmatprep.subr.bf16.mxu0 0
    %357 = vmatpush2.bf16.xpose.msra.mxu0 0
    %358 = vmatprep.subr.bf16.mxu0 0
    %359 = vmatpush2.bf16.xpose.msra.mxu0 0
    %360 = vmatprep.subr.bf16.mxu0 0
    %361 = vmatpush2.bf16.xpose.msra.mxu0 0
    %362 = vmatprep.subr.bf16.mxu0 0
    %363 = vmatpush2.bf16.xpose.msra.mxu0 0
    %364 = vmatprep.subr.bf16.mxu0 0
    %365 = vmatpush2.bf16.xpose.msra.mxu0 0
    %366 = vmatprep.subr.bf16.mxu0 0
    %367 = vmatpush2.bf16.xpose.msra.mxu0 0
    %368 = vmatprep.mubr.bf16.mxu0 0
    %369 = vmatmul.mubr.bf16.gmra.mxu0 %v318
    %v370 = vpop.f32.mrf.mxu0
    %v371 = vadd.f32 0.0, %v370
    %v372 = vpop.f32.mrf.mxu0
    %v373 = vpop.f32.mrf.mxu0
    %v374 = vadd.f32 0.0, %v373
    %v375 = vpop.f32.mrf.mxu0
    %376 = vmatprep.mubr.bf16.mxu0 0
    %377 = vmatmul.mubr.bf16.gmra.mxu0 %v319
    %v378 = vpop.f32.mrf.mxu0
    %v379 = vadd.f32 0.0, %v378
    %v380 = vpop.f32.mrf.mxu0
    %v381 = vpop.f32.mrf.mxu0
    %v382 = vadd.f32 0.0, %v381
    %v383 = vpop.f32.mrf.mxu0
    %384 = vdwg.mxu0
    %v385 = vmul.f32 %v371, 2.0
    %v386 = vmul.f32 %v374, 2.0
    %v387 = vmul.f32 %v379, 2.0
    %v388 = vmul.f32 %v382, 2.0
    %v389 = vsub.f32 %v385, 2.0
    %v390 = vsub.f32 %v386, 2.0
    %v391 = vsub.f32 %v387, 2.0
    %v392 = vsub.f32 %v388, 2.0
    %v393 = vmul.f32 %v389, 1.442695
    %v394 = vpow.pop %v393
    %v395 = vmul.f32 %v390, 1.442695
    %v396 = vpow.pop %v395
    %v397 = vmul.f32 %v391, 1.442695
    %v398 = vpow.pop %v397
    %v399 = vmul.f32 %v392, 1.442695
    %v400 = vpow.pop %v399
    %vm401 = vcmask 261120
    %v402 = vsel %vm401, %v394, 0.0
    %403 = vadd.xlane.f32.xlu0 %v402
    %v404 = vpop.xlane.xlu0 %403
    %v405 = vsel %vm401, %v396, 0.0
    %406 = vadd.xlane.f32.xlu0 %v405
    %v407 = vpop.xlane.xlu0 %406
    %v408 = vsel %vm401, %v398, 0.0
    %409 = vadd.xlane.f32.xlu0 %v408
    %v410 = vpop.xlane.xlu0 %409
    %v411 = vsel %vm401, %v400, 0.0
    %412 = vadd.xlane.f32.xlu0 %v411
    %v413 = vpop.xlane.xlu0 %412
    %v414 = vlog2.pop %v404
    %v415 = vmul.f32 %v414, 0.6931472
    %v416 = vlog2.pop %v407
    %v417 = vmul.f32 %v416, 0.6931472
    %v418 = vlog2.pop %v410
    %v419 = vmul.f32 %v418, 0.6931472
    %v420 = vlog2.pop %v413
    %v421 = vmul.f32 %v420, 0.6931472
    %v422 = vadd.f32 %v415, 2.0
    %v423 = vadd.f32 %v417, 2.0
    %v424 = vadd.f32 %v419, 2.0
    %v425 = vadd.f32 %v421, 2.0
    %v426 = vld [vmem:[#allocation4] sm:$0x1]
    %v427 = vadd.f32 %v402, %v405
    %v428 = vadd.f32 %v427, %v408
    %v429 = vadd.f32 %v428, %v411
    %v430 = vrot.slane %v429, 4
    %v431 = vadd.f32 %v429, %v430
    %v432 = vrot.slane %v431, 2
    %v433 = vadd.f32 %v431, %v432
    %v434 = vrot.slane %v433, 1
    %v435 = vadd.f32 %v433, %v434
    %v436 = vadd.f32 %v426, %v435
    %vm437 = vcmask 253952
    %438 = vst.msk [vmem:[#allocation4] sm:$0x1] %vm437, %v436
    %v439 = vld [vmem:[#allocation7] sm:$0xff]
    %v440 = vld [vmem:[#allocation7 + $0x8] sm:$0xff]
    %v441 = vld [vmem:[#allocation7 + $0x10] sm:$0xff]
    %v442 = vld [vmem:[#allocation7 + $0x18] sm:$0xff]
    %v443 = vmul.f32 %v298, 2.0
    %v444 = vmul.f32 %v300, 2.0
    %v445 = vmul.f32 %v302, 2.0
    %v446 = vmul.f32 %v304, 2.0
    %v447 = vsub.f32 %v443, %v422
    %v448 = vsub.f32 %v444, %v423
    %v449 = vsub.f32 %v445, %v424
    %v450 = vsub.f32 %v446, %v425
    %v451 = vadd.f32 %v439, %v447
    %v452 = vadd.f32 %v440, %v448
    %v453 = vadd.f32 %v441, %v449
    %v454 = vadd.f32 %v442, %v450
    %455 = vst.msk [vmem:[#allocation7] sm:$0xff] %vm313, %v451
    %456 = vst.msk [vmem:[#allocation7 + $0x8] sm:$0xff] %vm313, %v452
    %457 = vst.msk [vmem:[#allocation7 + $0x10] sm:$0xff] %vm313, %v453
    %458 = vst.msk [vmem:[#allocation7 + $0x18] sm:$0xff] %vm313, %v454
    // Predicated region
    $region26: #{tpu_custom_call.1} parent=1 // pred_check
      %p459 = pneg %p42
    $region27: #{tpu_custom_call.1} parent=1 // pred_check_branch
      %461 = sbr.rel (%p459) target = $region29
    $region28: #{tpu_custom_call.1} parent=1 // pred_region
      %v462 = vld [vmem:[#allocation5] sm:$0x1]
      %vm463 = vcmask 1040384
      %v464 = vsel %vm463, %v462, 0.0
      %465 = vadd.xlane.f32.xlu0 %v464
      %v466 = vpop.xlane.xlu0 %465
      %v467 = vrot.slane %v466, 4
      %v468 = vadd.f32 %v466, %v467
      %v469 = vrot.slane %v468, 2
      %v470 = vadd.f32 %v468, %v469
      %v471 = vrot.slane %v470, 1
      %v472 = vadd.f32 %v470, %v471
      %s473 = vtos %v472
      %s474 = smul.f32 %s473, 0.00024414063
      %v475 = vld [vmem:[#allocation6] sm:$0xff]
      %v476 = vld [vmem:[#allocation6 + $0x8] sm:$0xff]
      %v477 = vld [vmem:[#allocation6 + $0x10] sm:$0xff]
      %v478 = vld [vmem:[#allocation6 + $0x18] sm:$0xff]
      %v479 = vsel %vm313, %v475, 0.0
      %v480 = vsel %vm313, %v476, 0.0
      %v481 = vadd.f32 %v479, %v480
      %v482 = vsel %vm313, %v477, 0.0
      %v483 = vadd.f32 %v481, %v482
      %v484 = vsel %vm313, %v478, 0.0
      %v485 = vadd.f32 %v483, %v484
      %486 = vadd.xlane.f32.xlu0 %v485
      %v487 = vpop.xlane.xlu0 %486
      %v488 = vrot.slane %v487, 4
      %v489 = vadd.f32 %v487, %v488
      %v490 = vrot.slane %v489, 2
      %v491 = vadd.f32 %v489, %v490
      %v492 = vrot.slane %v491, 1
      %v493 = vadd.f32 %v491, %v492
      %s494 = vtos %v493
      %s495 = smul.f32 %s494, 0.03125
      %s496 = ssub.f32 1.0, %s495
      %s497 = smul.f32 %s474, 0.5
      %s498 = smul.f32 %s496, 0.5
      %s499 = sadd.f32 %s497, %s498
      %v500 = vld [vmem:[#allocation4] sm:$0x1]
      %v501 = vlog2.pop %v500
      %v502 = vmul.f32 %v501, 0.6931472
      %v503 = vadd.f32 %v502, 2.0
      %s504 = smul.f32 %s494, 2.0
      %v505 = vsel %vm437, %v503, 0.0
      %506 = vadd.xlane.f32.xlu0 %v505
      %v507 = vpop.xlane.xlu0 %506
      %v508 = vrot.slane %v507, 4
      %v509 = vadd.f32 %v507, %v508
      %v510 = vrot.slane %v509, 2
      %v511 = vadd.f32 %v509, %v510
      %v512 = vrot.slane %v511, 1
      %v513 = vadd.f32 %v511, %v512
      %s514 = vtos %v513
      %s515 = ssub.f32 %s504, %s514
      %v516 = vld [vmem:[#allocation7] sm:$0xff]
      %v517 = vld [vmem:[#allocation7 + $0x8] sm:$0xff]
      %v518 = vld [vmem:[#allocation7 + $0x10] sm:$0xff]
      %v519 = vld [vmem:[#allocation7 + $0x18] sm:$0xff]
      %v520 = vsel %vm313, %v516, 0.0
      %v521 = vsel %vm313, %v517, 0.0
      %v522 = vadd.f32 %v520, %v521
      %v523 = vsel %vm313, %v518, 0.0
      %v524 = vadd.f32 %v522, %v523
      %v525 = vsel %vm313, %v519, 0.0
      %v526 = vadd.f32 %v524, %v525
      %527 = vadd.xlane.f32.xlu0 %v526
      %v528 = vpop.xlane.xlu0 %527
      %v529 = vrot.slane %v528, 4
      %v530 = vadd.f32 %v528, %v529
      %v531 = vrot.slane %v530, 2
      %v532 = vadd.f32 %v530, %v531
      %v533 = vrot.slane %v532, 1
      %v534 = vadd.f32 %v532, %v533
      %s535 = vtos %v534
      %s536 = smul.f32 %s535, 0.5
      %s537 = smul.f32 %s515, 0.5
      %s538 = sadd.f32 %s536, %s537
      %s539 = ssub.f32 0.0, %s538
      %s540 = smul.f32 %s539, 0.03125
      %s541 = smul.f32 %s499, 0.5
      %s542 = smul.f32 %s540, 0.5
      %s543 = sadd.f32 %s541, %s542
      %v544 = vstv %s543
      %vm545 = vcmask 0
      %546 = vst.msk [vmem:[#allocation15] sm:$0x1] %vm545, %v544
    $region29: #{tpu_custom_call.1} parent=1 // pred_fallthru
      _
    // Predicated region
    $region30: #{tpu_custom_call.1} parent=1 // pred_check
      _
    $region31: #{tpu_custom_call.1} parent=1 // pred_check_branch
      %548 = sbr.rel (0) target = $region33
    $region32: #{tpu_custom_call.1} parent=1 // pred_region
      %s550 = ssub.s32 16, 16
      %551 = vsyncadd [#allocation12], %s550
      %s553 = sshll.u32 [#allocation15], 4
      %s554 = int_to_ptr.vmem [resolvable:$true] %s553
      %556 = dma.vmem_to_hbm [thread:$0]  %s554, 16, %s3, [#allocation12]
    $region33: #{tpu_custom_call.1} parent=1 // pred_fallthru
      _
    // Predicated region
    $region34: #{tpu_custom_call.1} parent=1 // pred_check
      _
    $region35: #{tpu_custom_call.1} parent=1 // pred_check_branch
      %558 = sbr.rel (0) target = $region37
    $region36: #{tpu_custom_call.1} parent=1 // pred_region
      %559 = dma.done [#allocation12], 16
    $region37: #{tpu_custom_call.1} parent=1 // pred_fallthru
      _
    %560 = vsyncpa [#allocation11], 1
    %561 = vsyncpa [#allocation14], 1
    %562 = vsyncpa [#allocation12], 1
  %563 = vsyncmov [#allocation9]
  %s564 = vpop.sfrf %563
  %p565 = scmp.eq.s32.totalorder %s564, 0
  %p566 = pneg %p565
  %568 = shalt.err (%p566)

</llo_original>
